<compile_context>
chip_gen: v7x
topology: tpu7x:2x2x1
jax: 0.10.0
libtpu: 0.0.40
codegen_flags: <defaults>
</compile_context>

<pallas_src>
import math

import jax
import jax.numpy as jnp
import numpy as np
from jax.experimental import pallas as pl
from jax.experimental.pallas import tpu as pltpu


# --------------------------------------------------------------------------- #
# Kernel: single invocation, statically-unrolled layer loop
# --------------------------------------------------------------------------- #
def _lstm_fused_kernel(x_ref, h_ref, c_ref, w_ref, b_ref, out_ref):
    """Whole-array VMEM refs:

    x_ref   : (B, D_in)            external input
    h_ref   : (L, B, H)            previous hidden states
    c_ref   : (L, B, H)            previous cell states
    w_ref   : (L, Kx + H, 4H)      packed gate weights [x-part | h-part],
                                   gate order along 4H: [f, i, o, c~]
    b_ref   : (L, 1, 4H)           packed gate biases (b_x + b_h)
    out_ref : (B, 2*L*H)           lane-dense slab [c_0 | h_0 | c_1 | h_1 | ...]
    """
    L, B, H = h_ref.shape
    K = w_ref.shape[1]
    Kx = K - H                      # padded width of the x-part of the weights
    D_in = x_ref.shape[1]

    outs = []
    layer_in = x_ref[...]           # (B, D_in) for layer 0
    d_in = D_in
    for l in range(L):              # static unroll: carry stays in vregs
        # All four gates from two small MXU passes: x-part + h-part (+ bias).
        gates = (
            jnp.dot(layer_in, w_ref[l, :d_in, :],
                    preferred_element_type=jnp.float32)
            + jnp.dot(h_ref[l], w_ref[l, Kx:, :],
                      preferred_element_type=jnp.float32)
            + b_ref[l]
        )                                               # (B, 4H)

        # Transcendentals: sigmoid once over [f|i|o], tanh only over c~.
        sig = jax.nn.sigmoid(gates[:, : 3 * H])
        c_tilde = jnp.tanh(gates[:, 3 * H:])
        f_t = sig[:, 0 * H:1 * H]
        i_t = sig[:, 1 * H:2 * H]
        o_t = sig[:, 2 * H:3 * H]

        c_new = c_ref[l] * f_t + i_t * c_tilde
        h_new = o_t * jnp.tanh(c_new)

        outs.append(c_new)
        outs.append(h_new)

        layer_in = h_new            # next layer's input (width H)
        d_in = H

    # Single lane-dense (B, 2*L*H) store -> one unmasked, coalesced writeback.
    out_ref[...] = jnp.concatenate(outs, axis=1)


# --------------------------------------------------------------------------- #
# Wrapper
# --------------------------------------------------------------------------- #
@jax.jit
def lstm_forward(cell_state, hidden_state, x, w_cat, b_cat):
    """Matches LSTM.forward: returns updated (cell_state, hidden_state).

    cell_state, hidden_state : (L, B, H) float32
    x                        : (B, D_in) float32
    w_cat                    : (L, Kx + H, 4H) packed gate weights
    b_cat                    : (L, 1, 4H) packed gate biases
    """
    L, B, H = hidden_state.shape

    vmem = pl.BlockSpec(memory_space=pltpu.MemorySpace.VMEM)
    out = pl.pallas_call(
        _lstm_fused_kernel,
        out_shape=jax.ShapeDtypeStruct((B, 2 * L * H), jnp.float32),
        in_specs=[vmem, vmem, vmem, vmem, vmem],
        out_specs=vmem,
    )(x, hidden_state, cell_state, w_cat, b_cat)

    # Split the lane-dense slab back into (L, B, H) cell / hidden stacks.
    out = out.reshape(B, L, 2, H)
    cell_new = jnp.transpose(out[:, :, 0, :], (1, 0, 2))
    hidden_new = jnp.transpose(out[:, :, 1, :], (1, 0, 2))
    return cell_new, hidden_new


# --------------------------------------------------------------------------- #
# Parameter construction (torch nn.Linear-style) and packing
# --------------------------------------------------------------------------- #
def _linear_init(key, in_dim, out_dim):
    """torch nn.Linear default init; W stored (out, in) like torch."""
    kw, kb = jax.random.split(key)
    bound = 1.0 / math.sqrt(in_dim)
    w = jax.random.uniform(kw, (out_dim, in_dim), jnp.float32, -bound, bound)
    b = jax.random.uniform(kb, (out_dim,), jnp.float32, -bound, bound)
    return w, b


def init_lstm_params(key, n_layers, input_dim, hidden_dim):
    """Per layer, gates in module order [forget, input_sig, input_tanh, output]:
       each gate = ((Wx, bx), (Wh, bh)) with torch (out, in) weight layout."""
    params = []
    for layer in range(n_layers):
        d_in = input_dim if layer == 0 else hidden_dim
        gates = []
        for _ in range(4):
            key, kx, kh = jax.random.split(key, 3)
            gates.append((_linear_init(kx, d_in, hidden_dim),
                          _linear_init(kh, hidden_dim, hidden_dim)))
        params.append(gates)
    return params


def pack_lstm_params(params, input_dim, hidden_dim):
    """Pack to (L, Kx+H, 4H) weights / (L, 1, 4H) biases.

    Kx = max(D_in, H) rounded up to a sublane multiple (8) so all static
    weight slices in the kernel are sublane-aligned.  Packed gate order along
    the 4H axis is [forget, input_sig, output, input_tanh] = [f, i, o, c~].
    """
    L = len(params)
    H = hidden_dim
    Kx = max(input_dim, hidden_dim)
    Kx = ((Kx + 7) // 8) * 8
    w_cat = np.zeros((L, Kx + H, 4 * H), np.float32)
    b_cat = np.zeros((L, 1, 4 * H), np.float32)
    order = (0, 1, 3, 2)            # module-order index per packed gate slot
    for l, gates in enumerate(params):
        d_in = input_dim if l == 0 else hidden_dim
        for g, src in enumerate(order):
            (wx, bx), (wh, bh) = gates[src]
            w_cat[l, :d_in, g * H:(g + 1) * H] = np.asarray(wx).T
            w_cat[l, Kx:Kx + H, g * H:(g + 1) * H] = np.asarray(wh).T
            b_cat[l, 0, g * H:(g + 1) * H] = np.asarray(bx) + np.asarray(bh)
    return jnp.asarray(w_cat), jnp.asarray(b_cat)


# --------------------------------------------------------------------------- #
# Pure-JAX reference (faithful to the PyTorch module: 8 separate Linear's)
# --------------------------------------------------------------------------- #
def ref_forward(cell_state, hidden_state, x, params):
    def lin(a, wb):
        w, b = wb
        return jnp.dot(a, w.T, precision=jax.lax.Precision.HIGHEST) + b

    new_c, new_h = [], []
    layer_in = x
    for l, gates in enumerate(params):
        h = hidden_state[l]
        c = cell_state[l]
        (fx, fh), (isx, ish), (itx, ith), (ox, oh) = gates
        f = jax.nn.sigmoid(lin(layer_in, fx) + lin(h, fh))
        i = jax.nn.sigmoid(lin(layer_in, isx) + lin(h, ish))
        ct = jnp.tanh(lin(layer_in, itx) + lin(h, ith))
        c_new = c * f + i * ct
        o = jax.nn.sigmoid(lin(layer_in, ox) + lin(h, oh))
        h_new = o * jnp.tanh(c_new)
        new_c.append(c_new)
        new_h.append(h_new)
        layer_in = h_new
    return jnp.stack(new_c), jnp.stack(new_h)


# --------------------------------------------------------------------------- #
if __name__ == "__main__":
    n_layers = 2
    input_dim = 16
    hidden_dim = 32
    batch = 4

    key = jax.random.PRNGKey(0)
    k_params, k_x, k_h, k_c = jax.random.split(key, 4)

    params = init_lstm_params(k_params, n_layers, input_dim, hidden_dim)
    w_cat, b_cat = pack_lstm_params(params, input_dim, hidden_dim)

    x = jax.random.normal(k_x, (batch, input_dim), jnp.float32)
    hidden_state = jax.random.normal(k_h, (n_layers, batch, hidden_dim), jnp.float32)
    cell_state = jax.random.normal(k_c, (n_layers, batch, hidden_dim), jnp.float32)

    c_out, h_out = lstm_forward(cell_state, hidden_state, x, w_cat, b_cat)
    jax.block_until_ready((c_out, h_out))

    ref_c, ref_h = ref_forward(cell_state, hidden_state, x, params)

    assert jnp.allclose(c_out, ref_c, atol=2e-4, rtol=2e-4), \
        float(jnp.max(jnp.abs(c_out - ref_c)))
    assert jnp.allclose(h_out, ref_h, atol=2e-4, rtol=2e-4), \
        float(jnp.max(jnp.abs(h_out - ref_h)))
    print("KERNEL_OK")
</pallas_src>

<mosaic_0001>
module attributes {stable_mosaic.version = 11 : i64} {
  func.func @_lstm_fused_kernel(%arg0: memref<4x16xf32, #tpu.memory_space<vmem>>, %arg1: memref<2x4x32xf32, #tpu.memory_space<vmem>>, %arg2: memref<2x4x32xf32, #tpu.memory_space<vmem>>, %arg3: memref<2x64x128xf32, #tpu.memory_space<vmem>>, %arg4: memref<2x1x128xf32, #tpu.memory_space<vmem>>, %arg5: memref<4x128xf32, #tpu.memory_space<vmem>>) attributes {dimension_semantics = [], scalar_prefetch = 0 : i64, scratch_operands = 0 : i64, tpu.core_type = #tpu.core_type<tc>} {
    %c0 = arith.constant 0 : index
    %c0_0 = arith.constant 0 : index
    %0 = vector.load %arg0[%c0, %c0_0] : memref<4x16xf32, #tpu.memory_space<vmem>>, vector<4x16xf32>
    %c0_1 = arith.constant 0 : index
    %c0_2 = arith.constant 0 : index
    %c0_3 = arith.constant 0 : index
    %1 = vector.load %arg3[%c0_1, %c0_2, %c0_3] : memref<2x64x128xf32, #tpu.memory_space<vmem>>, vector<1x16x128xf32>
    %2 = vector.shape_cast %1 : vector<1x16x128xf32> to vector<16x128xf32>
    %cst = arith.constant dense<0.000000e+00> : vector<4x128xf32>
    %3 = tpu.matmul %0, %2, %cst {dimension_numbers = #tpu.dot_dimension_numbers<[1], [0], [0], [1], [0, 0, 1, 1], [], []>} : vector<4x16xf32>, vector<16x128xf32>, vector<4x128xf32> -> vector<4x128xf32>
    %c0_4 = arith.constant 0 : index
    %c0_5 = arith.constant 0 : index
    %c0_6 = arith.constant 0 : index
    %4 = vector.load %arg1[%c0_4, %c0_5, %c0_6] : memref<2x4x32xf32, #tpu.memory_space<vmem>>, vector<1x4x32xf32>
    %5 = vector.shape_cast %4 : vector<1x4x32xf32> to vector<4x32xf32>
    %c0_7 = arith.constant 0 : index
    %c32 = arith.constant 32 : index
    %c0_8 = arith.constant 0 : index
    %6 = vector.load %arg3[%c0_7, %c32, %c0_8] : memref<2x64x128xf32, #tpu.memory_space<vmem>>, vector<1x32x128xf32>
    %7 = vector.shape_cast %6 : vector<1x32x128xf32> to vector<32x128xf32>
    %cst_9 = arith.constant dense<0.000000e+00> : vector<4x128xf32>
    %8 = tpu.matmul %5, %7, %cst_9 {dimension_numbers = #tpu.dot_dimension_numbers<[1], [0], [0], [1], [0, 0, 1, 1], [], []>} : vector<4x32xf32>, vector<32x128xf32>, vector<4x128xf32> -> vector<4x128xf32>
    %9 = arith.addf %3, %8 : vector<4x128xf32>
    %c0_10 = arith.constant 0 : index
    %c0_11 = arith.constant 0 : index
    %c0_12 = arith.constant 0 : index
    %10 = vector.load %arg4[%c0_10, %c0_11, %c0_12] : memref<2x1x128xf32, #tpu.memory_space<vmem>>, vector<1x1x128xf32>
    %11 = vector.shape_cast %10 : vector<1x1x128xf32> to vector<1x128xf32>
    %12 = vector.broadcast %11 : vector<1x128xf32> to vector<4x128xf32>
    %13 = arith.addf %9, %12 : vector<4x128xf32>
    %14 = vector.extract_strided_slice %13 {offsets = [0, 0], sizes = [4, 96], strides = [1, 1]} : vector<4x128xf32> to vector<4x96xf32>
    %15 = arith.negf %14 : vector<4x96xf32>
    %16 = math.exp %15 : vector<4x96xf32>
    %cst_13 = arith.constant 1.000000e+00 : f32
    %17 = vector.broadcast %cst_13 : f32 to vector<4x96xf32>
    %18 = arith.addf %17, %16 : vector<4x96xf32>
    %19 = arith.divf %17, %18 : vector<4x96xf32>
    %20 = vector.extract_strided_slice %13 {offsets = [0, 96], sizes = [4, 32], strides = [1, 1]} : vector<4x128xf32> to vector<4x32xf32>
    %21 = math.tanh %20 : vector<4x32xf32>
    %22 = vector.extract_strided_slice %19 {offsets = [0, 0], sizes = [4, 32], strides = [1, 1]} : vector<4x96xf32> to vector<4x32xf32>
    %23 = vector.extract_strided_slice %19 {offsets = [0, 32], sizes = [4, 32], strides = [1, 1]} : vector<4x96xf32> to vector<4x32xf32>
    %24 = vector.extract_strided_slice %19 {offsets = [0, 64], sizes = [4, 32], strides = [1, 1]} : vector<4x96xf32> to vector<4x32xf32>
    %c0_14 = arith.constant 0 : index
    %c0_15 = arith.constant 0 : index
    %c0_16 = arith.constant 0 : index
    %25 = vector.load %arg2[%c0_14, %c0_15, %c0_16] : memref<2x4x32xf32, #tpu.memory_space<vmem>>, vector<1x4x32xf32>
    %26 = vector.shape_cast %25 : vector<1x4x32xf32> to vector<4x32xf32>
    %27 = arith.mulf %26, %22 : vector<4x32xf32>
    %28 = arith.mulf %23, %21 : vector<4x32xf32>
    %29 = arith.addf %27, %28 : vector<4x32xf32>
    %30 = math.tanh %29 : vector<4x32xf32>
    %31 = arith.mulf %24, %30 : vector<4x32xf32>
    %c1 = arith.constant 1 : index
    %c0_17 = arith.constant 0 : index
    %c0_18 = arith.constant 0 : index
    %32 = vector.load %arg3[%c1, %c0_17, %c0_18] : memref<2x64x128xf32, #tpu.memory_space<vmem>>, vector<1x32x128xf32>
    %33 = vector.shape_cast %32 : vector<1x32x128xf32> to vector<32x128xf32>
    %cst_19 = arith.constant dense<0.000000e+00> : vector<4x128xf32>
    %34 = tpu.matmul %31, %33, %cst_19 {dimension_numbers = #tpu.dot_dimension_numbers<[1], [0], [0], [1], [0, 0, 1, 1], [], []>} : vector<4x32xf32>, vector<32x128xf32>, vector<4x128xf32> -> vector<4x128xf32>
    %c1_20 = arith.constant 1 : index
    %c0_21 = arith.constant 0 : index
    %c0_22 = arith.constant 0 : index
    %35 = vector.load %arg1[%c1_20, %c0_21, %c0_22] : memref<2x4x32xf32, #tpu.memory_space<vmem>>, vector<1x4x32xf32>
    %36 = vector.shape_cast %35 : vector<1x4x32xf32> to vector<4x32xf32>
    %c1_23 = arith.constant 1 : index
    %c32_24 = arith.constant 32 : index
    %c0_25 = arith.constant 0 : index
    %37 = vector.load %arg3[%c1_23, %c32_24, %c0_25] : memref<2x64x128xf32, #tpu.memory_space<vmem>>, vector<1x32x128xf32>
    %38 = vector.shape_cast %37 : vector<1x32x128xf32> to vector<32x128xf32>
    %cst_26 = arith.constant dense<0.000000e+00> : vector<4x128xf32>
    %39 = tpu.matmul %36, %38, %cst_26 {dimension_numbers = #tpu.dot_dimension_numbers<[1], [0], [0], [1], [0, 0, 1, 1], [], []>} : vector<4x32xf32>, vector<32x128xf32>, vector<4x128xf32> -> vector<4x128xf32>
    %40 = arith.addf %34, %39 : vector<4x128xf32>
    %c1_27 = arith.constant 1 : index
    %c0_28 = arith.constant 0 : index
    %c0_29 = arith.constant 0 : index
    %41 = vector.load %arg4[%c1_27, %c0_28, %c0_29] : memref<2x1x128xf32, #tpu.memory_space<vmem>>, vector<1x1x128xf32>
    %42 = vector.shape_cast %41 : vector<1x1x128xf32> to vector<1x128xf32>
    %43 = vector.broadcast %42 : vector<1x128xf32> to vector<4x128xf32>
    %44 = arith.addf %40, %43 : vector<4x128xf32>
    %45 = vector.extract_strided_slice %44 {offsets = [0, 0], sizes = [4, 96], strides = [1, 1]} : vector<4x128xf32> to vector<4x96xf32>
    %46 = arith.negf %45 : vector<4x96xf32>
    %47 = math.exp %46 : vector<4x96xf32>
    %cst_30 = arith.constant 1.000000e+00 : f32
    %48 = vector.broadcast %cst_30 : f32 to vector<4x96xf32>
    %49 = arith.addf %48, %47 : vector<4x96xf32>
    %50 = arith.divf %48, %49 : vector<4x96xf32>
    %51 = vector.extract_strided_slice %44 {offsets = [0, 96], sizes = [4, 32], strides = [1, 1]} : vector<4x128xf32> to vector<4x32xf32>
    %52 = math.tanh %51 : vector<4x32xf32>
    %53 = vector.extract_strided_slice %50 {offsets = [0, 0], sizes = [4, 32], strides = [1, 1]} : vector<4x96xf32> to vector<4x32xf32>
    %54 = vector.extract_strided_slice %50 {offsets = [0, 32], sizes = [4, 32], strides = [1, 1]} : vector<4x96xf32> to vector<4x32xf32>
    %55 = vector.extract_strided_slice %50 {offsets = [0, 64], sizes = [4, 32], strides = [1, 1]} : vector<4x96xf32> to vector<4x32xf32>
    %c1_31 = arith.constant 1 : index
    %c0_32 = arith.constant 0 : index
    %c0_33 = arith.constant 0 : index
    %56 = vector.load %arg2[%c1_31, %c0_32, %c0_33] : memref<2x4x32xf32, #tpu.memory_space<vmem>>, vector<1x4x32xf32>
    %57 = vector.shape_cast %56 : vector<1x4x32xf32> to vector<4x32xf32>
    %58 = arith.mulf %57, %53 : vector<4x32xf32>
    %59 = arith.mulf %54, %52 : vector<4x32xf32>
    %60 = arith.addf %58, %59 : vector<4x32xf32>
    %61 = math.tanh %60 : vector<4x32xf32>
    %62 = arith.mulf %55, %61 : vector<4x32xf32>
    %63 = tpu.concatenate %29, %31, %60, %62 in 1 : vector<4x32xf32>, vector<4x32xf32>, vector<4x32xf32>, vector<4x32xf32> -> vector<4x128xf32>
    %c0_34 = arith.constant 0 : index
    %c0_35 = arith.constant 0 : index
    %64 = vector.load %arg5[%c0_34, %c0_35] : memref<4x128xf32, #tpu.memory_space<vmem>>, vector<4x128xf32>
    tpu.vector_store %arg5[%c0_34, %c0_35], %63 {strides = array<i32>} : memref<4x128xf32, #tpu.memory_space<vmem>>, vector<4x128xf32>,
    return
  }
}

</mosaic_0001>

<llo_original>
// kernel: lstm_forward.1
$region0: #{lstm_forward.1}
  #allocation0 [shape = 'u32[]', space=smem, size = 0x4, offset = 0x4, fixed_abs, tag = 'smem constant byte address 0x4 - core index']
  #allocation1 [shape = 'u32[144,128]{1,0:T(1,128)}', space=vmem, size = 0x12000, scoped, tag = 'internal scratch']
  %s0 = inlined_call_operand.vmem [shape: f32[4,16], index: 0, kind: input, shape index: {}]
  %s1 = inlined_call_operand.hbm [shape: f32[2,4,32], index: 1, kind: input, shape index: {}]
  %s2 = inlined_call_operand.hbm [shape: f32[2,4,32], index: 2, kind: input, shape index: {}]
  %s3 = inlined_call_operand.hbm [shape: f32[2,64,128], index: 3, kind: input, shape index: {}]
  %s4 = inlined_call_operand.vmem [shape: f32[2,1,128], index: 4, kind: input, shape index: {}]
  %s5 = inlined_call_operand.vmem [shape: f32[4,128], index: 5, kind: output, shape index: {}]
  %s6 = sld [smem:[#allocation0]]
  $region42: #{lstm_forward.1} parent=0
    _
  %s8 = ssub.s32 1, %s6
  %s9 = scalar_select 0, %s8, %s6
  $region1: #{lstm_forward.1} parent=0
    #allocation2 [shape = 'u8[4096]{0}', space=vmem, size = 0x1000, scoped, tag = 'input window, operand 1, single buffered']
    #allocation3 [shape = 's32[1]{0}', space=sflag, size = 0x4, scoped, tag = 'scoped memory for lstm_forward.1']
    #allocation4 [shape = 'u8[4096]{0}', space=vmem, size = 0x1000, scoped, tag = 'input window, operand 2, single buffered']
    #allocation5 [shape = 's32[1]{0}', space=sflag, size = 0x4, scoped, tag = 'scoped memory for lstm_forward.1']
    #allocation6 [shape = 'u8[65536]{0}', space=vmem, size = 0x10000, scoped, tag = 'input window, operand 3, single buffered']
    %10 = vsyncpa [#allocation3], 0
    %11 = vsyncpa [#allocation5], 0
    // Predicated region
    $region2: #{lstm_forward.1} parent=1 // pred_check
      _
    $region3: #{lstm_forward.1} parent=1 // pred_check_branch
      %13 = sbr.rel (0) target = $region5
    $region4: #{lstm_forward.1} parent=1 // pred_region
      _
    $region5: #{lstm_forward.1} parent=1 // pred_fallthru
      _
    // Predicated region
    $region6: #{lstm_forward.1} parent=1 // pred_check
      _
    $region7: #{lstm_forward.1} parent=1 // pred_check_branch
      %15 = sbr.rel (0) target = $region9
    $region8: #{lstm_forward.1} parent=1 // pred_region
      %s17 = ssub.s32 128, 128
      %18 = vsyncadd [#allocation3], %s17
      %s19 = sshll.u32 [#allocation2], 4
      %s20 = int_to_ptr.vmem [resolvable:$true] %s19
      %25 = dma.hbm_to_vmem [thread:$0]  %s1, 128, %s20, [#allocation3], 64, 64, 4
    $region9: #{lstm_forward.1} parent=1 // pred_fallthru
      _
    // Predicated region
    $region10: #{lstm_forward.1} parent=1 // pred_check
      _
    $region11: #{lstm_forward.1} parent=1 // pred_check_branch
      %27 = sbr.rel (0) target = $region13
    $region12: #{lstm_forward.1} parent=1 // pred_region
      %s29 = ssub.s32 128, 128
      %30 = vsyncadd [#allocation5], %s29
      %s31 = sshll.u32 [#allocation4], 4
      %s32 = int_to_ptr.vmem [resolvable:$true] %s31
      %37 = dma.hbm_to_vmem [thread:$0]  %s2, 128, %s32, [#allocation5], 64, 64, 4
    $region13: #{lstm_forward.1} parent=1 // pred_fallthru
      _
    // Predicated region
    $region14: #{lstm_forward.1} parent=1 // pred_check
      _
    $region15: #{lstm_forward.1} parent=1 // pred_check_branch
      %39 = sbr.rel (0) target = $region17
    $region16: #{lstm_forward.1} parent=1 // pred_region
      %s41 = ssub.s32 2048, 2048
      %42 = vsyncadd [#allocation5], %s41
      %s43 = sshll.u32 [#allocation6], 4
      %s44 = int_to_ptr.vmem [resolvable:$true] %s43
      %49 = dma.hbm_to_vmem [thread:$0]  %s3, 2048, %s44, [#allocation5], 128, 128, 8
    $region17: #{lstm_forward.1} parent=1 // pred_fallthru
      _
    // Predicated region
    $region18: #{lstm_forward.1} parent=1 // pred_check
      _
    $region19: #{lstm_forward.1} parent=1 // pred_check_branch
      %51 = sbr.rel (0) target = $region21
    $region20: #{lstm_forward.1} parent=1 // pred_region
      _
    $region21: #{lstm_forward.1} parent=1 // pred_fallthru
      _
    // Predicated region
    $region22: #{lstm_forward.1} parent=1 // pred_check
      _
    $region23: #{lstm_forward.1} parent=1 // pred_check_branch
      %53 = sbr.rel (0) target = $region25
    $region24: #{lstm_forward.1} parent=1 // pred_region
      %54 = dma.done [#allocation3], 128
    $region25: #{lstm_forward.1} parent=1 // pred_fallthru
      _
    // Predicated region
    $region26: #{lstm_forward.1} parent=1 // pred_check
      _
    $region27: #{lstm_forward.1} parent=1 // pred_check_branch
      %56 = sbr.rel (0) target = $region29
    $region28: #{lstm_forward.1} parent=1 // pred_region
      %57 = dma.done [#allocation5], 128
    $region29: #{lstm_forward.1} parent=1 // pred_fallthru
      _
    // Predicated region
    $region30: #{lstm_forward.1} parent=1 // pred_check
      _
    $region31: #{lstm_forward.1} parent=1 // pred_check_branch
      %59 = sbr.rel (0) target = $region33
    $region32: #{lstm_forward.1} parent=1 // pred_region
      %60 = dma.done [#allocation5], 2048
    $region33: #{lstm_forward.1} parent=1 // pred_fallthru
      _
    %v61 = vld [vmem:[%s0] sm:$0xf]
    %v62 = vld [vmem:[#allocation6] sm:$0xff]
    %v63 = vld [vmem:[#allocation6 + $0x8] sm:$0xff]
    %v64 = vld [vmem:[#allocation2] sm:$0xf]
    %v65 = vld [vmem:[#allocation6 + $0x20] sm:$0xff]
    %v66 = vld [vmem:[#allocation6 + $0x28] sm:$0xff]
    %v67 = vld [vmem:[#allocation6 + $0x30] sm:$0xff]
    %v68 = vld [vmem:[#allocation6 + $0x38] sm:$0xff]
    %vm69 = vcmask 261120
    %v71 = vsel %vm69, %v64, 0
    %73 = vmatprep.subr.mxu0 0.0
    %74 = vmatpush1.msra.mxu0 %v65
    %75 = vmatprep.subr.mxu0 0.0
    %76 = vmatpush1.msra.mxu0 %v66
    %77 = vmatprep.subr.mxu0 0.0
    %78 = vmatpush1.msra.mxu0 %v67
    %79 = vmatprep.subr.mxu0 0.0
    %80 = vmatpush1.msra.mxu0 %v68
    %81 = vmatprep.subr.mxu0 0.0
    %82 = vmatpush1.msra.mxu0 0.0
    %83 = vmatprep.subr.mxu0 0.0
    %84 = vmatpush1.msra.mxu0 0.0
    %85 = vmatprep.subr.mxu0 0.0
    %86 = vmatpush1.msra.mxu0 0.0
    %87 = vmatprep.subr.mxu0 0.0
    %88 = vmatpush1.msra.mxu0 0.0
    %89 = vmatprep.subr.mxu0 0.0
    %90 = vmatpush1.msra.mxu0 0.0
    %91 = vmatprep.subr.mxu0 0.0
    %92 = vmatpush1.msra.mxu0 0.0
    %93 = vmatprep.subr.mxu0 0.0
    %94 = vmatpush1.msra.mxu0 0.0
    %95 = vmatprep.subr.mxu0 0.0
    %96 = vmatpush1.msra.mxu0 0.0
    %97 = vmatprep.subr.mxu0 0.0
    %98 = vmatpush1.msra.mxu0 0.0
    %99 = vmatprep.subr.mxu0 0.0
    %100 = vmatpush1.msra.mxu0 0.0
    %101 = vmatprep.subr.mxu0 0.0
    %102 = vmatpush1.msra.mxu0 0.0
    %103 = vmatprep.subr.mxu0 0.0
    %104 = vmatpush1.msra.mxu0 0.0
    %105 = vmatprep.subr.mxu0 0.0
    %106 = vmatpush1.msra.mxu0 0.0
    %107 = vmatprep.subr.mxu0 0.0
    %108 = vmatpush1.msra.mxu0 0.0
    %109 = vmatprep.subr.mxu0 0.0
    %110 = vmatpush1.msra.mxu0 0.0
    %111 = vmatprep.subr.mxu0 0.0
    %112 = vmatpush1.msra.mxu0 0.0
    %113 = vmatprep.subr.mxu0 0.0
    %114 = vmatpush1.msra.mxu0 0.0
    %115 = vmatprep.subr.mxu0 0.0
    %116 = vmatpush1.msra.mxu0 0.0
    %117 = vmatprep.subr.mxu0 0.0
    %118 = vmatpush1.msra.mxu0 0.0
    %119 = vmatprep.subr.mxu0 0.0
    %120 = vmatpush1.msra.mxu0 0.0
    %121 = vmatprep.subr.mxu0 0.0
    %122 = vmatpush1.msra.mxu0 0.0
    %123 = vmatprep.subr.mxu0 0.0
    %124 = vmatpush1.msra.mxu0 0.0
    %125 = vmatprep.subr.mxu0 0.0
    %126 = vmatpush1.msra.mxu0 0.0
    %127 = vmatprep.subr.mxu0 0.0
    %128 = vmatpush1.msra.mxu0 0.0
    %129 = vmatprep.subr.mxu0 0.0
    %130 = vmatpush1.msra.mxu0 0.0
    %131 = vmatprep.subr.mxu0 0.0
    %132 = vmatpush1.msra.mxu0 0.0
    %133 = vmatprep.subr.mxu0 0.0
    %134 = vmatpush1.msra.mxu0 0.0
    %135 = vmatprep.subr.mxu0 0.0
    %136 = vmatpush1.msra.mxu0 0.0
    %137 = vmatprep.mubr.f32.mxu0 0.0
    %138 = vmatmul.mubr.f32.gmra.mrb[0].mxu0 %v71
    %v139 = vpop.f32.mrb[0].mxu0
    %v140 = vadd.f32 0.0, %v139
    %v141 = vpop.f32.mrb[0].mxu0
    %142 = vdwg.mxu0
    %vm143 = vcmask 130048
    %v145 = vsel %vm143, %v61, 0
    %147 = vmatprep.subr.mxu0 0.0
    %148 = vmatpush1.msra.mxu0 %v62
    %149 = vmatprep.subr.mxu0 0.0
    %150 = vmatpush1.msra.mxu0 %v63
    %151 = vmatprep.subr.mxu0 0.0
    %152 = vmatpush1.msra.mxu0 0.0
    %153 = vmatprep.subr.mxu0 0.0
    %154 = vmatpush1.msra.mxu0 0.0
    %155 = vmatprep.subr.mxu0 0.0
    %156 = vmatpush1.msra.mxu0 0.0
    %157 = vmatprep.subr.mxu0 0.0
    %158 = vmatpush1.msra.mxu0 0.0
    %159 = vmatprep.subr.mxu0 0.0
    %160 = vmatpush1.msra.mxu0 0.0
    %161 = vmatprep.subr.mxu0 0.0
    %162 = vmatpush1.msra.mxu0 0.0
    %163 = vmatprep.subr.mxu0 0.0
    %164 = vmatpush1.msra.mxu0 0.0
    %165 = vmatprep.subr.mxu0 0.0
    %166 = vmatpush1.msra.mxu0 0.0
    %167 = vmatprep.subr.mxu0 0.0
    %168 = vmatpush1.msra.mxu0 0.0
    %169 = vmatprep.subr.mxu0 0.0
    %170 = vmatpush1.msra.mxu0 0.0
    %171 = vmatprep.subr.mxu0 0.0
    %172 = vmatpush1.msra.mxu0 0.0
    %173 = vmatprep.subr.mxu0 0.0
    %174 = vmatpush1.msra.mxu0 0.0
    %175 = vmatprep.subr.mxu0 0.0
    %176 = vmatpush1.msra.mxu0 0.0
    %177 = vmatprep.subr.mxu0 0.0
    %178 = vmatpush1.msra.mxu0 0.0
    %179 = vmatprep.subr.mxu0 0.0
    %180 = vmatpush1.msra.mxu0 0.0
    %181 = vmatprep.subr.mxu0 0.0
    %182 = vmatpush1.msra.mxu0 0.0
    %183 = vmatprep.subr.mxu0 0.0
    %184 = vmatpush1.msra.mxu0 0.0
    %185 = vmatprep.subr.mxu0 0.0
    %186 = vmatpush1.msra.mxu0 0.0
    %187 = vmatprep.subr.mxu0 0.0
    %188 = vmatpush1.msra.mxu0 0.0
    %189 = vmatprep.subr.mxu0 0.0
    %190 = vmatpush1.msra.mxu0 0.0
    %191 = vmatprep.subr.mxu0 0.0
    %192 = vmatpush1.msra.mxu0 0.0
    %193 = vmatprep.subr.mxu0 0.0
    %194 = vmatpush1.msra.mxu0 0.0
    %195 = vmatprep.subr.mxu0 0.0
    %196 = vmatpush1.msra.mxu0 0.0
    %197 = vmatprep.subr.mxu0 0.0
    %198 = vmatpush1.msra.mxu0 0.0
    %199 = vmatprep.subr.mxu0 0.0
    %200 = vmatpush1.msra.mxu0 0.0
    %201 = vmatprep.subr.mxu0 0.0
    %202 = vmatpush1.msra.mxu0 0.0
    %203 = vmatprep.subr.mxu0 0.0
    %204 = vmatpush1.msra.mxu0 0.0
    %205 = vmatprep.subr.mxu0 0.0
    %206 = vmatpush1.msra.mxu0 0.0
    %207 = vmatprep.subr.mxu0 0.0
    %208 = vmatpush1.msra.mxu0 0.0
    %209 = vmatprep.subr.mxu0 0.0
    %210 = vmatpush1.msra.mxu0 0.0
    %211 = vmatprep.mubr.f32.mxu0 0.0
    %212 = vmatmul.mubr.f32.gmra.mrb[0].mxu0 %v145
    %v213 = vpop.f32.mrb[0].mxu0
    %v214 = vadd.f32 %v140, %v213
    %v215 = vpop.f32.mrb[0].mxu0
    %216 = vdwg.mxu0
    %v217 = vld [vmem:[%s4] sm:$0x1]
    %v219 = vlaneseq
    %v220 = vshrl.u32 %v219, 7
    %v221 = vsub.s32 0, %v220
    %v222 = vrot.slane %v217, %v221
    %v224 = vadd.f32 %v214, %v222
    %v225 = vxor.u32 %v224, 2147483648
    %v226 = vmul.f32 %v225, 1.442695
    %v227 = vpow.pop %v226
    %v228 = vadd.f32 %v227, 1.0
    %v229 = vrcp.pop %v228
    %v230 = vmul.f32 1.0, %v229
    %v231 = vtanh.pop %v224
    %v232 = vld [vmem:[#allocation4] sm:$0xf]
    %v233 = vmul.f32 %v232, %v230
    %235 = vrot.lane.b32.xlu0 %v231, 64
    %v236 = vpop.permute.xlu0 %235
    %v238 = vmul.f32 %v230, %v236
    %240 = vrot.lane.b32.xlu0 %v238, 96
    %v241 = vpop.permute.xlu0 %240
    %v243 = vadd.f32 %v233, %v241
    %v244 = vtanh.pop %v243
    %246 = vrot.lane.b32.xlu0 %v244, 64
    %v247 = vpop.permute.xlu0 %246
    %v249 = vmul.f32 %v230, %v247
    %s250 = scalar_lea.vmem [#allocation6], 64
    %v251 = vld [vmem:[%s250] sm:$0xff]
    %v252 = vld [vmem:[%s250 + $0x8] sm:$0xff]
    %v253 = vld [vmem:[%s250 + $0x10] sm:$0xff]
    %v254 = vld [vmem:[%s250 + $0x18] sm:$0xff]
    %s255 = scalar_lea.vmem [#allocation2], 4
    %v256 = vld [vmem:[%s255] sm:$0xf]
    %v257 = vld [vmem:[%s250 + $0x20] sm:$0xff]
    %v258 = vld [vmem:[%s250 + $0x28] sm:$0xff]
    %v259 = vld [vmem:[%s250 + $0x30] sm:$0xff]
    %v260 = vld [vmem:[%s250 + $0x38] sm:$0xff]
    %v262 = vsel %vm69, %v256, 0
    %264 = vmatprep.subr.mxu0 0.0
    %265 = vmatpush1.msra.mxu0 %v257
    %266 = vmatprep.subr.mxu0 0.0
    %267 = vmatpush1.msra.mxu0 %v258
    %268 = vmatprep.subr.mxu0 0.0
    %269 = vmatpush1.msra.mxu0 %v259
    %270 = vmatprep.subr.mxu0 0.0
    %271 = vmatpush1.msra.mxu0 %v260
    %272 = vmatprep.subr.mxu0 0.0
    %273 = vmatpush1.msra.mxu0 0.0
    %274 = vmatprep.subr.mxu0 0.0
    %275 = vmatpush1.msra.mxu0 0.0
    %276 = vmatprep.subr.mxu0 0.0
    %277 = vmatpush1.msra.mxu0 0.0
    %278 = vmatprep.subr.mxu0 0.0
    %279 = vmatpush1.msra.mxu0 0.0
    %280 = vmatprep.subr.mxu0 0.0
    %281 = vmatpush1.msra.mxu0 0.0
    %282 = vmatprep.subr.mxu0 0.0
    %283 = vmatpush1.msra.mxu0 0.0
    %284 = vmatprep.subr.mxu0 0.0
    %285 = vmatpush1.msra.mxu0 0.0
    %286 = vmatprep.subr.mxu0 0.0
    %287 = vmatpush1.msra.mxu0 0.0
    %288 = vmatprep.subr.mxu0 0.0
    %289 = vmatpush1.msra.mxu0 0.0
    %290 = vmatprep.subr.mxu0 0.0
    %291 = vmatpush1.msra.mxu0 0.0
    %292 = vmatprep.subr.mxu0 0.0
    %293 = vmatpush1.msra.mxu0 0.0
    %294 = vmatprep.subr.mxu0 0.0
    %295 = vmatpush1.msra.mxu0 0.0
    %296 = vmatprep.subr.mxu0 0.0
    %297 = vmatpush1.msra.mxu0 0.0
    %298 = vmatprep.subr.mxu0 0.0
    %299 = vmatpush1.msra.mxu0 0.0
    %300 = vmatprep.subr.mxu0 0.0
    %301 = vmatpush1.msra.mxu0 0.0
    %302 = vmatprep.subr.mxu0 0.0
    %303 = vmatpush1.msra.mxu0 0.0
    %304 = vmatprep.subr.mxu0 0.0
    %305 = vmatpush1.msra.mxu0 0.0
    %306 = vmatprep.subr.mxu0 0.0
    %307 = vmatpush1.msra.mxu0 0.0
    %308 = vmatprep.subr.mxu0 0.0
    %309 = vmatpush1.msra.mxu0 0.0
    %310 = vmatprep.subr.mxu0 0.0
    %311 = vmatpush1.msra.mxu0 0.0
    %312 = vmatprep.subr.mxu0 0.0
    %313 = vmatpush1.msra.mxu0 0.0
    %314 = vmatprep.subr.mxu0 0.0
    %315 = vmatpush1.msra.mxu0 0.0
    %316 = vmatprep.subr.mxu0 0.0
    %317 = vmatpush1.msra.mxu0 0.0
    %318 = vmatprep.subr.mxu0 0.0
    %319 = vmatpush1.msra.mxu0 0.0
    %320 = vmatprep.subr.mxu0 0.0
    %321 = vmatpush1.msra.mxu0 0.0
    %322 = vmatprep.subr.mxu0 0.0
    %323 = vmatpush1.msra.mxu0 0.0
    %324 = vmatprep.subr.mxu0 0.0
    %325 = vmatpush1.msra.mxu0 0.0
    %326 = vmatprep.subr.mxu0 0.0
    %327 = vmatpush1.msra.mxu0 0.0
    %328 = vmatprep.mubr.f32.mxu0 0.0
    %329 = vmatmul.mubr.f32.gmra.mrb[0].mxu0 %v262
    %v330 = vpop.f32.mrb[0].mxu0
    %v331 = vadd.f32 0.0, %v330
    %v332 = vpop.f32.mrb[0].mxu0
    %333 = vdwg.mxu0
    %335 = vrot.lane.b32.xlu0 %v249, 64
    %v336 = vpop.permute.xlu0 %335
    %v337 = vsel %vm69, %v336, 0
    %339 = vmatprep.subr.mxu0 0.0
    %340 = vmatpush1.msra.mxu0 %v251
    %341 = vmatprep.subr.mxu0 0.0
    %342 = vmatpush1.msra.mxu0 %v252
    %343 = vmatprep.subr.mxu0 0.0
    %344 = vmatpush1.msra.mxu0 %v253
    %345 = vmatprep.subr.mxu0 0.0
    %346 = vmatpush1.msra.mxu0 %v254
    %347 = vmatprep.subr.mxu0 0.0
    %348 = vmatpush1.msra.mxu0 0.0
    %349 = vmatprep.subr.mxu0 0.0
    %350 = vmatpush1.msra.mxu0 0.0
    %351 = vmatprep.subr.mxu0 0.0
    %352 = vmatpush1.msra.mxu0 0.0
    %353 = vmatprep.subr.mxu0 0.0
    %354 = vmatpush1.msra.mxu0 0.0
    %355 = vmatprep.subr.mxu0 0.0
    %356 = vmatpush1.msra.mxu0 0.0
    %357 = vmatprep.subr.mxu0 0.0
    %358 = vmatpush1.msra.mxu0 0.0
    %359 = vmatprep.subr.mxu0 0.0
    %360 = vmatpush1.msra.mxu0 0.0
    %361 = vmatprep.subr.mxu0 0.0
    %362 = vmatpush1.msra.mxu0 0.0
    %363 = vmatprep.subr.mxu0 0.0
    %364 = vmatpush1.msra.mxu0 0.0
    %365 = vmatprep.subr.mxu0 0.0
    %366 = vmatpush1.msra.mxu0 0.0
    %367 = vmatprep.subr.mxu0 0.0
    %368 = vmatpush1.msra.mxu0 0.0
    %369 = vmatprep.subr.mxu0 0.0
    %370 = vmatpush1.msra.mxu0 0.0
    %371 = vmatprep.subr.mxu0 0.0
    %372 = vmatpush1.msra.mxu0 0.0
    %373 = vmatprep.subr.mxu0 0.0
    %374 = vmatpush1.msra.mxu0 0.0
    %375 = vmatprep.subr.mxu0 0.0
    %376 = vmatpush1.msra.mxu0 0.0
    %377 = vmatprep.subr.mxu0 0.0
    %378 = vmatpush1.msra.mxu0 0.0
    %379 = vmatprep.subr.mxu0 0.0
    %380 = vmatpush1.msra.mxu0 0.0
    %381 = vmatprep.subr.mxu0 0.0
    %382 = vmatpush1.msra.mxu0 0.0
    %383 = vmatprep.subr.mxu0 0.0
    %384 = vmatpush1.msra.mxu0 0.0
    %385 = vmatprep.subr.mxu0 0.0
    %386 = vmatpush1.msra.mxu0 0.0
    %387 = vmatprep.subr.mxu0 0.0
    %388 = vmatpush1.msra.mxu0 0.0
    %389 = vmatprep.subr.mxu0 0.0
    %390 = vmatpush1.msra.mxu0 0.0
    %391 = vmatprep.subr.mxu0 0.0
    %392 = vmatpush1.msra.mxu0 0.0
    %393 = vmatprep.subr.mxu0 0.0
    %394 = vmatpush1.msra.mxu0 0.0
    %395 = vmatprep.subr.mxu0 0.0
    %396 = vmatpush1.msra.mxu0 0.0
    %397 = vmatprep.subr.mxu0 0.0
    %398 = vmatpush1.msra.mxu0 0.0
    %399 = vmatprep.subr.mxu0 0.0
    %400 = vmatpush1.msra.mxu0 0.0
    %401 = vmatprep.subr.mxu0 0.0
    %402 = vmatpush1.msra.mxu0 0.0
    %403 = vmatprep.mubr.f32.mxu0 0.0
    %404 = vmatmul.mubr.f32.gmra.mrb[0].mxu0 %v337
    %v405 = vpop.f32.mrb[0].mxu0
    %v406 = vadd.f32 %v331, %v405
    %v407 = vpop.f32.mrb[0].mxu0
    %408 = vdwg.mxu0
    %s409 = scalar_lea.vmem %s4, 1
    %v410 = vld [vmem:[%s409] sm:$0x1]
    %v412 = vlaneseq
    %v413 = vshrl.u32 %v412, 7
    %v414 = vsub.s32 0, %v413
    %v415 = vrot.slane %v410, %v414
    %v417 = vadd.f32 %v406, %v415
    %v418 = vxor.u32 %v417, 2147483648
    %v419 = vmul.f32 %v418, 1.442695
    %v420 = vpow.pop %v419
    %v421 = vadd.f32 %v420, 1.0
    %v422 = vrcp.pop %v421
    %v423 = vmul.f32 1.0, %v422
    %v424 = vtanh.pop %v417
    %s425 = scalar_lea.vmem [#allocation4], 4
    %v426 = vld [vmem:[%s425] sm:$0xf]
    %v427 = vmul.f32 %v426, %v423
    %429 = vrot.lane.b32.xlu0 %v424, 64
    %v430 = vpop.permute.xlu0 %429
    %v432 = vmul.f32 %v423, %v430
    %434 = vrot.lane.b32.xlu0 %v432, 96
    %v435 = vpop.permute.xlu0 %434
    %v437 = vadd.f32 %v427, %v435
    %v438 = vtanh.pop %v437
    %440 = vrot.lane.b32.xlu0 %v438, 64
    %v441 = vpop.permute.xlu0 %440
    %v443 = vmul.f32 %v423, %v441
    %444 = vrot.lane.b32.xlu0 %v249, 96
    %v445 = vpop.permute.xlu0 %444
    %448 = vrot.lane.b32.xlu0 %v437, 64
    %v449 = vpop.permute.xlu0 %448
    %452 = vrot.lane.b32.xlu0 %v443, 32
    %v453 = vpop.permute.xlu0 %452
    %v455 = vsel %vm69, %v243, %v445
    %vm456 = vcmask 523264
    %v457 = vsel %vm456, %v455, %v449
    %vm458 = vcmask 785408
    %v459 = vsel %vm458, %v457, %v453
    %460 = vst [vmem:[%s5] sm:$0xf] %v459
    // Predicated region
    $region34: #{lstm_forward.1} parent=1 // pred_check
      _
    $region35: #{lstm_forward.1} parent=1 // pred_check_branch
      %462 = sbr.rel (0) target = $region37
    $region36: #{lstm_forward.1} parent=1 // pred_region
      _
    $region37: #{lstm_forward.1} parent=1 // pred_fallthru
      _
    // Predicated region
    $region38: #{lstm_forward.1} parent=1 // pred_check
      _
    $region39: #{lstm_forward.1} parent=1 // pred_check_branch
      %464 = sbr.rel (0) target = $region41
    $region40: #{lstm_forward.1} parent=1 // pred_region
      _
    $region41: #{lstm_forward.1} parent=1 // pred_fallthru
      _
    %465 = vsyncpa [#allocation3], 1
    %466 = vsyncpa [#allocation5], 1

</llo_original>
